<compile_context>
chip_gen: v7x
topology: tpu7x:2x2x1
jax: 0.10.0
libtpu: 0.0.40
codegen_flags: <defaults>
</compile_context>

<pallas_src>
import functools

import jax
import jax.numpy as jnp
from jax.experimental import pallas as pl
from jax.experimental.pallas import tpu as pltpu

W0 = 1.0   # weights[0]
W1 = 0.5   # weights[1]


def _clip_max_kernel(frame_ref, clip_ref, acc_ref, *, total_t, time_tile,
                     mask_last):
    """Running max over the time axis of one batch row, streamed in blocks."""
    t = pl.program_id(1)

    @pl.when(t == 0)
    def _():
        acc_ref[...] = jnp.full_like(acc_ref, -jnp.inf)

    fw = frame_ref[...]                               # (1, tT, C), native dtype
    if mask_last:
        # The last time block may overrun T; mask overrun rows with the
        # dtype's lowest value (max-neutral).  No-op for in-bounds blocks.
        row = jax.lax.broadcasted_iota(jnp.int32, fw.shape, 1)
        if jnp.issubdtype(fw.dtype, jnp.floating):
            lowest = jnp.finfo(fw.dtype).min
        else:
            lowest = jnp.iinfo(fw.dtype).min
        fw = jnp.where(t * time_tile + row < total_t, fw,
                       jnp.asarray(lowest, fw.dtype))

    blk_max = jnp.max(fw, axis=1, keepdims=True)      # (1, 1, C)
    acc_ref[...] = jnp.maximum(acc_ref[...], blk_max.astype(jnp.float32))

    @pl.when(t == pl.num_programs(1) - 1)
    def _():
        clip_ref[...] = acc_ref[...]


def _loss_finalize_kernel(logit_ref, target_ref, clip_ref, out_ref):
    x = logit_ref[...].astype(jnp.float32)            # (B, C) logits
    y = target_ref[...].astype(jnp.float32)           # (B, C) targets
    clip = clip_ref[...]                              # (B, C) f32 probabilities

    # BCEWithLogitsLoss, numerically stable, mean reduction:
    #   max(x, 0) - x*y + log(1 + exp(-|x|))
    nl = jnp.maximum(x, 0.0) - x * y + jnp.log1p(jnp.exp(-jnp.abs(x)))
    normal_loss = jnp.sum(nl) / jnp.float32(nl.size)

    # BCELoss on clip probabilities, logs clamped at -100 (PyTorch semantics).
    log_p = jnp.maximum(jnp.log(clip), -100.0)
    log_1mp = jnp.maximum(jnp.log(1.0 - clip), -100.0)
    aux = -(y * log_p + (1.0 - y) * log_1mp)
    aux_loss = jnp.sum(aux) / jnp.float32(aux.size)

    out_ref[0, 0] = W0 * normal_loss + W1 * aux_loss


def _sublane_packing(itemsize):
    # rows per packed sublane group: 8 for 4-byte, 16 for 2-byte, 32 for 1-byte
    return max(8, 32 // max(1, int(itemsize)))


def _round_up(x, m):
    return ((x + m - 1) // m) * m


def improved_panns_loss(logit, framewise_output, target, *, time_tile=None):
    """logit: (B, C), framewise_output: (B, T, C), target: (B, C) -> scalar f32."""
    B, T, C = framewise_output.shape
    dtype = framewise_output.dtype
    itemsize = jnp.dtype(dtype).itemsize
    pack = _sublane_packing(itemsize)

    # ---- generation-aware VMEM budget --------------------------------------
    try:
        vmem_cap = int(pltpu.get_tpu_info().vmem_capacity_bytes)
    except Exception:
        vmem_cap = 64 * 1024 * 1024          # conservative fallback (v7x per-TC)

    c_pad = _round_up(C, 128)                # VMEM tile is lane-padded
    row_bytes = c_pad * itemsize             # one time row of one batch element

    if time_tile is None:
        # ~70% of VMEM for the double-buffered frame stream, <= 32 MiB/buffer.
        per_buffer = min(32 * 1024 * 1024, (vmem_cap * 7 // 10) // 2)
        tT = per_buffer // row_bytes
    else:
        tT = int(time_tile)
    tT = max(pack, (tT // pack) * pack)      # dtype-aware sublane rounding
    if tT >= T:
        tT = T                               # full extent is always legal

    n_t = pl.cdiv(T, tT)
    mask_last = (T % tT) != 0

    frame_buf_bytes = _round_up(tT, pack) * row_bytes
    vmem_limit = 2 * frame_buf_bytes + (8 << 20)       # 2 stream buffers + margin
    vmem_limit = int(min(max(vmem_limit, 32 * 1024 * 1024), vmem_cap))

    # ---- pass 1: stream (B, T, C) once, running max over T -----------------
    clip3 = pl.pallas_call(
        functools.partial(_clip_max_kernel, total_t=T, time_tile=tT,
                          mask_last=mask_last),
        out_shape=jax.ShapeDtypeStruct((B, 1, C), jnp.float32),
        grid_spec=pltpu.PrefetchScalarGridSpec(
            num_scalar_prefetch=0,
            grid=(B, n_t),
            in_specs=[pl.BlockSpec((1, tT, C), lambda b, t: (b, t, 0))],
            out_specs=pl.BlockSpec((1, 1, C), lambda b, t: (b, 0, 0)),
            scratch_shapes=[pltpu.VMEM((1, 1, C), jnp.float32)],
        ),
        compiler_params=pltpu.CompilerParams(
            # B is independent -> shard across TensorCores (v7x); T carries the
            # running-max accumulator -> arbitrary.
            dimension_semantics=("parallel", "arbitrary"),
            vmem_limit_bytes=vmem_limit,
        ),
    )(framewise_output)
    clip = clip3[:, 0, :]                    # (B, C) f32

    # ---- pass 2: tiny finalize over (B, C) ----------------------------------
    out = pl.pallas_call(
        _loss_finalize_kernel,
        out_shape=jax.ShapeDtypeStruct((1, 1), jnp.float32),
        grid_spec=pltpu.PrefetchScalarGridSpec(
            num_scalar_prefetch=0,
            grid=(1,),
            in_specs=[
                pl.BlockSpec((B, C), lambda i: (0, 0)),
                pl.BlockSpec((B, C), lambda i: (0, 0)),
                pl.BlockSpec((B, C), lambda i: (0, 0)),
            ],
            out_specs=pl.BlockSpec((1, 1), lambda i: (0, 0),
                                   memory_space=pltpu.MemorySpace.SMEM),
        ),
    )(logit, target, clip)
    return out[0, 0]


def _reference(logit, framewise_output, target):
    x = logit.astype(jnp.float32)
    y = target.astype(jnp.float32)
    nl = jnp.maximum(x, 0.0) - x * y + jnp.log1p(jnp.exp(-jnp.abs(x)))
    normal_loss = jnp.mean(nl)
    clip = jnp.max(framewise_output, axis=1).astype(jnp.float32)
    log_p = jnp.maximum(jnp.log(clip), -100.0)
    log_1mp = jnp.maximum(jnp.log(1.0 - clip), -100.0)
    aux_loss = jnp.mean(-(y * log_p + (1.0 - y) * log_1mp))
    return W0 * normal_loss + W1 * aux_loss


if __name__ == "__main__":
    B, T, C = 4, 40, 16
    key = jax.random.PRNGKey(0)
    k1, k2, k3 = jax.random.split(key, 3)

    logit = jax.random.normal(k1, (B, C), dtype=jnp.float32)
    # framewise_output is a probability map in (0, 1)
    framewise_output = jax.nn.sigmoid(
        jax.random.normal(k2, (B, T, C), dtype=jnp.float32))
    # binary multi-label targets, cast to float as in the torch module
    target = (jax.random.uniform(k3, (B, C)) > 0.5).astype(jnp.float32)

    # Multi-step grid with a ragged (in-kernel masked) last time block.
    loss_tiled = jax.block_until_ready(
        improved_panns_loss(logit, framewise_output, target, time_tile=16))
    # Auto-derived tile (single full-T block).
    loss_auto = jax.block_until_ready(
        improved_panns_loss(logit, framewise_output, target))

    ref = _reference(logit, framewise_output, target)
    assert jnp.allclose(loss_tiled, ref, rtol=1e-5, atol=1e-5), (loss_tiled, ref)
    assert jnp.allclose(loss_auto, ref, rtol=1e-5, atol=1e-5), (loss_auto, ref)

    # bf16 frame stream (halves HBM bytes of the dominant tensor); max is
    # exact in bf16, so the reference on the bf16-rounded frame matches.
    frame_bf16 = framewise_output.astype(jnp.bfloat16)
    loss_bf16 = jax.block_until_ready(
        improved_panns_loss(logit, frame_bf16, target, time_tile=24))
    ref_bf16 = _reference(logit, frame_bf16.astype(jnp.float32), target)
    assert jnp.allclose(loss_bf16, ref_bf16, rtol=1e-5, atol=1e-5), (loss_bf16,
                                                                     ref_bf16)

    print("KERNEL_OK")
</pallas_src>

<mosaic_0001>
module attributes {stable_mosaic.version = 11 : i64} {
  func.func @_clip_max_kernel(%arg0: i32, %arg1: i32, %arg2: memref<1x16x16xf32, #tpu.memory_space<vmem>>, %arg3: memref<1x1x16xf32, #tpu.memory_space<vmem>>, %arg4: memref<1x1x16xf32, #tpu.memory_space<vmem>>) attributes {dimension_semantics = [#tpu.dimension_semantics<parallel>, #tpu.dimension_semantics<arbitrary>], iteration_bounds = array<i64: 4, 3>, scalar_prefetch = 0 : i64, scratch_operands = 1 : i64, tpu.core_type = #tpu.core_type<tc>, window_params = [{transform_indices = @transform_0, window_bounds = array<i64: 1, 16, 16>}, {transform_indices = @transform_1, window_bounds = array<i64: 1, 1, 16>}]} {
    %c0_i32 = arith.constant 0 : i32
    %0 = arith.cmpi eq, %arg1, %c0_i32 : i32
    %1 = arith.extui %0 : i1 to i32
    %c0_i32_0 = arith.constant 0 : i32
    %2 = arith.cmpi ne, %1, %c0_i32_0 : i32
    scf.if %2 {
      %cst_11 = arith.constant 0xFF800000 : f32
      %20 = vector.broadcast %cst_11 : f32 to vector<1x1x16xf32>
      %c0_12 = arith.constant 0 : index
      %c0_13 = arith.constant 0 : index
      %c0_14 = arith.constant 0 : index
      %21 = vector.load %arg4[%c0_12, %c0_13, %c0_14] : memref<1x1x16xf32, #tpu.memory_space<vmem>>, vector<1x1x16xf32>
      tpu.vector_store %arg4[%c0_12, %c0_13, %c0_14], %20 {strides = array<i32>} : memref<1x1x16xf32, #tpu.memory_space<vmem>>, vector<1x1x16xf32>,
    } else {
    }
    %c0 = arith.constant 0 : index
    %c0_1 = arith.constant 0 : index
    %c0_2 = arith.constant 0 : index
    %3 = vector.load %arg2[%c0, %c0_1, %c0_2] : memref<1x16x16xf32, #tpu.memory_space<vmem>>, vector<1x16x16xf32>
    %4 = tpu.iota {dimensions = array<i32: 1>} : vector<1x16x16xi32>
    %c16_i32 = arith.constant 16 : i32
    %5 = arith.muli %arg1, %c16_i32 : i32
    %6 = vector.broadcast %5 : i32 to vector<1x16x16xi32>
    %7 = arith.addi %6, %4 : vector<1x16x16xi32>
    %c40_i32 = arith.constant 40 : i32
    %8 = vector.broadcast %c40_i32 : i32 to vector<1x16x16xi32>
    %9 = arith.cmpi slt, %7, %8 : vector<1x16x16xi32>
    %cst = arith.constant -3.40282347E+38 : f32
    %10 = vector.broadcast %cst : f32 to vector<1x16x16xf32>
    %11 = arith.select %9, %3, %10 : vector<1x16x16xi1>, vector<1x16x16xf32>
    %cst_3 = arith.constant dense<0xFF800000> : vector<1x16xf32>
    %12 = vector.multi_reduction <maximumf>, %11, %cst_3 [1] : vector<1x16x16xf32> to vector<1x16xf32>
    %13 = vector.shape_cast %12 : vector<1x16xf32> to vector<1x1x16xf32>
    %c0_4 = arith.constant 0 : index
    %c0_5 = arith.constant 0 : index
    %c0_6 = arith.constant 0 : index
    %14 = vector.load %arg4[%c0_4, %c0_5, %c0_6] : memref<1x1x16xf32, #tpu.memory_space<vmem>>, vector<1x1x16xf32>
    %15 = arith.maximumf %14, %13 : vector<1x1x16xf32>
    %c0_7 = arith.constant 0 : index
    %c0_8 = arith.constant 0 : index
    %c0_9 = arith.constant 0 : index
    %16 = vector.load %arg4[%c0_7, %c0_8, %c0_9] : memref<1x1x16xf32, #tpu.memory_space<vmem>>, vector<1x1x16xf32>
    tpu.vector_store %arg4[%c0_7, %c0_8, %c0_9], %15 {strides = array<i32>} : memref<1x1x16xf32, #tpu.memory_space<vmem>>, vector<1x1x16xf32>,
    %c2_i32 = arith.constant 2 : i32
    %17 = arith.cmpi eq, %arg1, %c2_i32 : i32
    %18 = arith.extui %17 : i1 to i32
    %c0_i32_10 = arith.constant 0 : i32
    %19 = arith.cmpi ne, %18, %c0_i32_10 : i32
    scf.if %19 {
      %c0_11 = arith.constant 0 : index
      %c0_12 = arith.constant 0 : index
      %c0_13 = arith.constant 0 : index
      %20 = vector.load %arg4[%c0_11, %c0_12, %c0_13] : memref<1x1x16xf32, #tpu.memory_space<vmem>>, vector<1x1x16xf32>
      %c0_14 = arith.constant 0 : index
      %c0_15 = arith.constant 0 : index
      %c0_16 = arith.constant 0 : index
      %21 = vector.load %arg3[%c0_14, %c0_15, %c0_16] : memref<1x1x16xf32, #tpu.memory_space<vmem>>, vector<1x1x16xf32>
      tpu.vector_store %arg3[%c0_14, %c0_15, %c0_16], %20 {strides = array<i32>} : memref<1x1x16xf32, #tpu.memory_space<vmem>>, vector<1x1x16xf32>,
    } else {
    }
    return
  }
  func.func @transform_0(%arg0: i32, %arg1: i32) -> (i32, i32, i32) {
    %c0_i32 = arith.constant 0 : i32
    %c0_i32_0 = arith.constant 0 : i32
    return %arg0, %arg1, %c0_i32 : i32, i32, i32
  }
  func.func @transform_1(%arg0: i32, %arg1: i32) -> (i32, i32, i32) {
    %c0_i32 = arith.constant 0 : i32
    %c0_i32_0 = arith.constant 0 : i32
    %c0_i32_1 = arith.constant 0 : i32
    return %arg0, %c0_i32, %c0_i32_0 : i32, i32, i32
  }
}

</mosaic_0001>

<llo_original>
// kernel: tpu_custom_call.1
$region0: #{tpu_custom_call.1}
  #allocation0 [shape = 'u32[]', space=smem, size = 0x4, offset = 0x4, fixed_abs, tag = 'smem constant byte address 0x4 - core index']
  #allocation1 [shape = 'u32[144,128]{1,0:T(1,128)}', space=vmem, size = 0x12000, scoped, tag = 'internal scratch']
  #allocation2 [shape = 'f32[1,1,16]{2,1,0:T(1,128)}', space=vmem, size = 0x200, scoped, tag = 'scratch operand']
  %s0 = inlined_call_operand.vmem [shape: f32[4,40,16], index: 0, kind: input, shape index: {}]
  %s1 = inlined_call_operand.hbm [shape: f32[4,1,16], index: 1, kind: output, shape index: {}]
  %s2 = sld [smem:[#allocation0]]
  $region45: #{tpu_custom_call.1} parent=0
    _
  %s4 = ssub.s32 1, %s2
  %s5 = scalar_select 0, %s4, %s2
  $region1: #{tpu_custom_call.1} parent=0
    #allocation3 [shape = 'u8[1024]{0}', space=vmem, size = 0x400, scoped, tag = 'output window, operand 0']
    #allocation4 [shape = 's32[2]{0}', space=sflag, size = 0x8, scoped, tag = 'scoped memory for tpu_custom_call.1']
    %6 = vsyncpa [#allocation4], 0
    %s7 = scalar_lea.sflag [#allocation4], 1
    %8 = vsyncpa %s7, 0
    loop: start=0, step=1, limit=14
    $region2: #{tpu_custom_call.1} parent=1 // loop_pre_header
      _
    $region3: #{tpu_custom_call.1} parent=1 // loop_header
      %s10 = sphi 0, %s14
      %p11 = scmp.ge.s32.totalorder %s10, 14
      %s17 = sphi 0, %s29
      %s18 = sphi 0, %s25
      %s19 = sphi 0, %s17
      %s20 = sphi 0, %s18
      %s21 = sphi 0, %s19
      %s22 = sphi 0, %s20
      %s34 = sphi 0, %s36
      %s37 = sphi 0, %s34
      %s38 = sphi 0, %s37
      %s54 = sphi 0, %s38
      %s60 = sphi 0, %s62
      %s63 = sphi 0, %s60
      %s64 = sphi 0, %s63
      %s80 = sphi 0, %s64
    $region4: #{tpu_custom_call.1} parent=1 // loop_header_branch
      %13 = sbr.rel (%p11) target = $region8
    $region5: #{tpu_custom_call.1} parent=1 // loop_body
      %s15 = ssub.s32 %s10, 1
      %s16 = ssub.s32 %s10, 2
      %s23 = sadd.s32 1, %s18
      %p24 = scmp.ge.s32.totalorder %s23, 3
      %s25 = scalar_select %p24, 0, %s23
      %s26 = sadd.s32 1, %s17
      %s27 = scalar_select %p24, %s26, %s17
      %p28 = scmp.ge.s32.totalorder %s27, 4
      %s29 = scalar_select %p28, 0, %s27
      %s30 = ssub.s32 %s17, %s29
      %s31 = ssub.s32 %s18, %s25
      %s32 = sor.u32 %s30, %s31
      %p33 = scmp.eq.s32.totalorder %s32, 0
      %s35 = sadd.s32 %s34, 1
      %s36 = scalar_select %p33, %s34, %s35
      %p39 = pneg %p33
      %p40 = scmp.eq.s32.totalorder %s10, 11
      %p41 = por %p39, %p40
      %p42 = scmp.ne.s32.totalorder %s34, %s37
      %p43 = scmp.eq.s32.totalorder %s10, 0
      %p44 = por %p42, %p43
      %p45 = scmp.ne.s32.totalorder %s34, %s37
      %p46 = scmp.eq.s32.totalorder %s15, 11
      %p47 = por %p45, %p46
      %p48 = scmp.ne.s32.totalorder %s37, %s38
      %p49 = scmp.eq.s32.totalorder %s15, 0
      %p50 = por %p48, %p49
      %p51 = scmp.ne.s32.totalorder %s37, %s38
      %p52 = scmp.eq.s32.totalorder %s16, 11
      %p53 = por %p51, %p52
      %p55 = scmp.ne.s32.totalorder %s38, %s54
      %p56 = scmp.eq.s32.totalorder %s16, 0
      %p57 = por %p55, %p56
      %s58 = ssub.s32 %s17, %s29
      %p59 = scmp.eq.s32.totalorder %s58, 0
      %s61 = sadd.s32 %s60, 1
      %s62 = scalar_select %p59, %s60, %s61
      %p65 = pneg %p59
      %p66 = scmp.eq.s32.totalorder %s10, 11
      %p67 = por %p65, %p66
      %p68 = scmp.ne.s32.totalorder %s60, %s63
      %p69 = scmp.eq.s32.totalorder %s10, 0
      %p70 = por %p68, %p69
      %p71 = scmp.ne.s32.totalorder %s60, %s63
      %p72 = scmp.eq.s32.totalorder %s15, 11
      %p73 = por %p71, %p72
      %p74 = scmp.ne.s32.totalorder %s63, %s64
      %p75 = scmp.eq.s32.totalorder %s15, 0
      %p76 = por %p74, %p75
      %p77 = scmp.ne.s32.totalorder %s63, %s64
      %p78 = scmp.eq.s32.totalorder %s16, 11
      %p79 = por %p77, %p78
      %p81 = scmp.ne.s32.totalorder %s64, %s80
      %p82 = scmp.eq.s32.totalorder %s16, 0
      %p83 = por %p81, %p82
      %p84 = scmp.le.s32.totalorder 1, %s10
      %p85 = scmp.lt.s32.totalorder %s10, 13
      %p86 = pnand %p84, %p85
      %p87 = pneg %p86
      // Predicated region
      $region9: #{tpu_custom_call.1} parent=5 // pred_check
        _
      $region10: #{tpu_custom_call.1} parent=5 // pred_check_branch
        %89 = sbr.rel (%p86) target = $region12
      $region11: #{tpu_custom_call.1} parent=5 // pred_region
        %s90 = ssub.s32 %s10, 1
      $region12: #{tpu_custom_call.1} parent=5 // pred_fallthru
        _
      %p91 = scmp.lt.s32.totalorder %s10, 12
      // Predicated region
      $region13: #{tpu_custom_call.1} parent=5 // pred_check
        %p92 = pneg %p91
      $region14: #{tpu_custom_call.1} parent=5 // pred_check_branch
        %94 = sbr.rel (%p92) target = $region16
      $region15: #{tpu_custom_call.1} parent=5 // pred_region
        // Predicated region
        $region17: #{tpu_custom_call.1} parent=15 // pred_check
          %p95 = pneg %p44
        $region18: #{tpu_custom_call.1} parent=15 // pred_check_branch
          %97 = sbr.rel (%p95) target = $region20
        $region19: #{tpu_custom_call.1} parent=15 // pred_region
          %s98 = smul.u32 2, %s18
          %s99 = ssub.s32 5, %s98
          %p100 = scmp.lt.s32.totalorder %s99, 2
          %s101 = scalar_select %p100, %s99, 2
          %s102 = smul.u32 128, %s101
          %p103 = scmp.lt.s32.totalorder %s17, 3
          %s104 = scalar_select %p103, %s17, 3
          %p105 = scmp.lt.s32.totalorder %s98, 4
          %s106 = scalar_select %p105, %s98, 4
          %s107 = smul.addr %s104, 5
          %s108 = sadd.s32 %s106, %s107
          %s109 = smul.addr %s108, 8
          %s110 = scalar_lea.vmem %s0, %s109
          %s111 = smul.u32 2, %s18
          %s112 = ssub.s32 5, %s111
          %p113 = scmp.lt.s32.totalorder %s112, 2
          %s114 = scalar_select %p113, %s112, 2
          %s115 = smul.u32 128, %s114
        $region20: #{tpu_custom_call.1} parent=15 // pred_fallthru
          _
      $region16: #{tpu_custom_call.1} parent=5 // pred_fallthru
        _
      %p116 = scmp.le.s32.totalorder 1, %s10
      %p117 = scmp.lt.s32.totalorder %s10, 13
      %p118 = pnand %p116, %p117
      %p119 = pneg %p118
      // Predicated region
      $region21: #{tpu_custom_call.1} parent=5 // pred_check
        _
      $region22: #{tpu_custom_call.1} parent=5 // pred_check_branch
        %121 = sbr.rel (%p118) target = $region24
      $region23: #{tpu_custom_call.1} parent=5 // pred_region
        %s122 = ssub.s32 %s10, 1
        %s123 = smul.u32 2, %s20
        %s124 = ssub.s32 5, %s123
        %p125 = scmp.lt.s32.totalorder %s124, 2
        %s126 = scalar_select %p125, %s124, 2
        %s127 = smul.u32 128, %s126
        %p128 = scmp.lt.s32.totalorder %s19, 3
        %s129 = scalar_select %p128, %s19, 3
        %p130 = scmp.lt.s32.totalorder %s123, 4
        %s131 = scalar_select %p130, %s123, 4
        %s132 = smul.addr %s129, 5
        %s133 = sadd.s32 %s131, %s132
        %s134 = smul.addr %s133, 8
        %s135 = scalar_lea.vmem %s0, %s134
        %p136 = pneg %p50
        %p137 = pneg %p47
        %p138 = pneg %p76
        %p139 = pneg %p73
        %s140 = sand.u32 %s63, 1
        %s141 = scalar_lea.sflag [#allocation4], %s140
        %s142 = sand.u32 %s63, 1
        %s143 = scalar_lea.vmem [#allocation3], %s142
        %s144 = smul.u32 2, %s20
        %s145 = ssub.s32 5, %s144
        %p146 = scmp.lt.s32.totalorder %s145, 2
        %s147 = scalar_select %p146, %s145, 2
        %s148 = smul.u32 128, %s147
        %p149 = scmp.lt.s32.totalorder %s19, 3
        %s150 = scalar_select %p149, %s19, 3
        %p151 = scmp.lt.s32.totalorder %s144, 4
        %s152 = scalar_select %p151, %s144, 4
        %s153 = smul.addr %s150, 5
        %s154 = sadd.s32 %s152, %s153
        %s155 = smul.addr %s154, 8
        %s156 = scalar_lea.vmem %s0, %s155
        %s157 = smul.u32 2, %s20
        %s158 = ssub.s32 5, %s157
        %p159 = scmp.lt.s32.totalorder %s158, 2
        %s160 = scalar_select %p159, %s158, 2
        %s161 = smul.u32 128, %s160
        %p162 = scmp.eq.s32.totalorder %s20, 0
        // Predicated region
        $region25: #{tpu_custom_call.1} parent=23 // pred_check
          %p163 = pneg %p162
        $region26: #{tpu_custom_call.1} parent=23 // pred_check_branch
          %165 = sbr.rel (%p163) target = $region28
        $region27: #{tpu_custom_call.1} parent=23 // pred_region
          %vm166 = vcmask 122880
          %167 = vst.msk [vmem:[#allocation2] sm:$0x1] %vm166, -inf
        $region28: #{tpu_custom_call.1} parent=23 // pred_fallthru
          _
        %v168 = vld [vmem:[%s156] sm:$0xff]
        %v169 = vld [vmem:[%s156 + $0x8] sm:$0xff]
        %v170 = vlaneseq
        %v171 = vshrl.u32 %v170, 7
        %v172 = vadd.s32 %v171, 8
        %s173 = smul.u32 %s20, 16
        %v174 = vstv %s173
        %v175 = vadd.s32 %v174, %v171
        %v176 = vadd.s32 %v174, %v172
        %vm177 = vcmp.lt.s32.totalorder %v175, 40
        %vm178 = vcmp.lt.s32.totalorder %v176, 40
        %v179 = vsel %vm177, %v168, -3.4028235e+38
        %v180 = vsel %vm178, %v169, -3.4028235e+38
        %vm181 = vcmask 130048
        %v182 = vsel %vm181, %v179, -inf
        %v183 = vsel %vm181, %v180, -inf
        %v184 = vmax.f32 %v182, %v183
        %v185 = vrot.slane %v184, 4
        %v186 = vmax.f32 %v184, %v185
        %v187 = vrot.slane %v186, 2
        %v188 = vmax.f32 %v186, %v187
        %v189 = vrot.slane %v188, 1
        %v190 = vmax.f32 %v188, %v189
        %v191 = vld [vmem:[#allocation2] sm:$0x1]
        %v192 = vmax.f32 %v191, %v190
        %vm193 = vcmask 122880
        %194 = vst.msk [vmem:[#allocation2] sm:$0x1] %vm193, %v192
        %p195 = scmp.eq.s32.totalorder %s20, 2
        // Predicated region
        $region29: #{tpu_custom_call.1} parent=23 // pred_check
          %p196 = pneg %p195
        $region30: #{tpu_custom_call.1} parent=23 // pred_check_branch
          %198 = sbr.rel (%p196) target = $region32
        $region31: #{tpu_custom_call.1} parent=23 // pred_region
          %v199 = vld [vmem:[#allocation2] sm:$0x1]
          %200 = vst.msk [vmem:[%s143] sm:$0x1] %vm193, %v199
        $region32: #{tpu_custom_call.1} parent=23 // pred_fallthru
          _
        %s201 = sand.u32 %s63, 1
        %s202 = scalar_lea.sflag [#allocation4], %s201
        %s203 = sand.u32 %s63, 1
        %s204 = scalar_lea.vmem [#allocation3], %s203
        // Predicated region
        $region33: #{tpu_custom_call.1} parent=23 // pred_check
          %p205 = pneg %p73
        $region34: #{tpu_custom_call.1} parent=23 // pred_check_branch
          %207 = sbr.rel (%p205) target = $region36
        $region35: #{tpu_custom_call.1} parent=23 // pred_region
          %s209 = ssub.s32 16, 16
          %210 = vsyncadd %s202, %s209
          %s211 = smul.addr %s19, 16
          %s212 = scalar_lea.hbm %s1, %s211
          %s214 = sshll.u32 %s204, 4
          %s215 = int_to_ptr.vmem [resolvable:$true] %s214
          %217 = dma.vmem_to_hbm [thread:$0]  %s215, 16, %s212, %s202
        $region36: #{tpu_custom_call.1} parent=23 // pred_fallthru
          _
      $region24: #{tpu_custom_call.1} parent=5 // pred_fallthru
        _
      %p218 = scmp.le.s32.totalorder 2, %s10
      // Predicated region
      $region37: #{tpu_custom_call.1} parent=5 // pred_check
        %p219 = pneg %p218
      $region38: #{tpu_custom_call.1} parent=5 // pred_check_branch
        %221 = sbr.rel (%p219) target = $region40
      $region39: #{tpu_custom_call.1} parent=5 // pred_region
        %s222 = ssub.s32 %s10, 2
        // Predicated region
        $region41: #{tpu_custom_call.1} parent=39 // pred_check
          %p223 = pneg %p79
        $region42: #{tpu_custom_call.1} parent=39 // pred_check_branch
          %225 = sbr.rel (%p223) target = $region44
        $region43: #{tpu_custom_call.1} parent=39 // pred_region
          %s226 = sand.u32 %s64, 1
          %s227 = scalar_lea.sflag [#allocation4], %s226
          %s228 = sand.u32 %s64, 1
          %s229 = scalar_lea.vmem [#allocation3], %s228
          %230 = dma.done %s227, 16
        $region44: #{tpu_custom_call.1} parent=39 // pred_fallthru
          _
      $region40: #{tpu_custom_call.1} parent=5 // pred_fallthru
        _
    $region6: #{tpu_custom_call.1} parent=1 // loop_footer
      %s14 = sadd.s32 1, %s10
    $region7: #{tpu_custom_call.1} parent=1 // loop_footer_branch
      %9 = sbr.rel target = $region3
    $region8: #{tpu_custom_call.1} parent=1 // loop_exit
      _
    %231 = vsyncpa [#allocation4], 1
    %s232 = scalar_lea.sflag [#allocation4], 1
    %233 = vsyncpa %s232, 1

</llo_original>
